<compile_context>
chip_gen: v7x
topology: tpu7x:2x2x1
jax: 0.10.0
libtpu: 0.0.40
codegen_flags: <defaults>
</compile_context>

<pallas_src>
import functools

import jax
import jax.numpy as jnp
from jax.experimental import pallas as pl
from jax.experimental.pallas import tpu as pltpu


def _sdpa_kernel(scale_ref, q_ref, k_ref, v_ref, *rest, has_bias, want_scores):
    """One grid step: TB (bs*head) slices x TQ query rows.

    scale_ref : SMEM (1,) f32
    q_ref     : (TB, TQ, dk)
    k_ref     : (TB, dk, Lk)
    v_ref     : (TB, Lk, dv)
    bias_ref  : (TB, TQ, Lk) f32   [only if has_bias]
    out_ref   : (TB, TQ, dv)
    attn_ref  : (TB, TQ, Lk)
    scores_ref: (TB, TQ, Lk)       [only if want_scores]
    """
    idx = 0
    bias_ref = None
    if has_bias:
        bias_ref = rest[idx]
        idx += 1
    out_ref = rest[idx]
    attn_ref = rest[idx + 1]
    scores_ref = rest[idx + 2] if want_scores else None

    scale = scale_ref[0]

    # Scale q (Lq*dk elements) instead of scores (Lq*Lk) and keep the MXU
    # operand in the input dtype (bf16 stays bf16 on v6e/v7x).
    q = (q_ref[...] * scale).astype(q_ref.dtype)           # (TB, TQ, dk)
    k = k_ref[...]                                          # (TB, dk, Lk)
    v = v_ref[...]                                          # (TB, Lk, dv)

    scores = jnp.einsum("bqd,bdk->bqk", q, k,
                        preferred_element_type=jnp.float32)
    if has_bias:
        scores = scores + bias_ref[...]                     # additive prev/masks

    # numerically-stable softmax along the key axis (all math in f32)
    m = jnp.max(scores, axis=-1, keepdims=True)
    e = jnp.exp(scores - m)
    denom = jnp.sum(e, axis=-1, keepdims=True)
    attn = e * pl.reciprocal(denom, approx=True)            # EUP slot, ~free

    out = jnp.einsum("bqk,bkd->bqd", attn.astype(v.dtype), v,
                     preferred_element_type=jnp.float32)

    if want_scores:
        scores_ref[...] = scores.astype(scores_ref.dtype)
    attn_ref[...] = attn.astype(attn_ref.dtype)
    out_ref[...] = out.astype(out_ref.dtype)


def _pick_tq(Lq):
    """Tile long query axes so per-step residency stays bounded (v7x: 64 MiB)."""
    if Lq <= 512:
        return Lq
    for t in (512, 256, 128, 64, 32, 16, 8):
        if Lq % t == 0:
            return t
    return Lq


def _pick_tb(B, per_slice_bytes, target=8, budget=24 << 20):
    """Largest divisor of B that fits the VMEM budget; prefer >= 2 grid steps."""
    max_tb = max(1, min(B, target, budget // max(per_slice_bytes, 1)))
    tb = 1
    for cand in range(1, int(max_tb) + 1):
        if B % cand == 0:
            tb = cand
    if B // tb < 2 and tb > 1:          # keep both v7x TensorCores busy
        for cand in range(tb - 1, 0, -1):
            if B % cand == 0:
                tb = cand
                break
    return tb


def _build_bias(bs, h, Lq, Lk, prev, attn_mask, key_padding_mask):
    """Fold prev / attn_mask / key_padding_mask into one additive f32 bias
    of shape (bs*h, Lq, Lk); returns None when all three are absent."""
    bias = None

    def acc(b, x):
        return x if b is None else b + x

    if prev is not None:
        bias = acc(bias, prev.astype(jnp.float32))
    if attn_mask is not None:
        if attn_mask.dtype == jnp.bool_:
            am = jnp.where(attn_mask, -jnp.inf, 0.0).astype(jnp.float32)
        else:
            am = attn_mask.astype(jnp.float32)
        am = jnp.reshape(am, (1,) * (4 - am.ndim) + am.shape)  # -> 4D broadcastable
        bias = acc(bias, am)
    if key_padding_mask is not None:
        kpm = jnp.where(key_padding_mask, -jnp.inf, 0.0).astype(jnp.float32)
        bias = acc(bias, kpm[:, None, None, :])
    if bias is None:
        return None
    return jnp.broadcast_to(bias, (bs, h, Lq, Lk)).reshape(bs * h, Lq, Lk)


@functools.partial(jax.jit, static_argnames=("res_attention",))
def scaled_dot_product_attention(q, k, v, scale, prev=None,
                                 key_padding_mask=None, attn_mask=None,
                                 res_attention=False):
    """q:[bs,h,Lq,dk]  k:[bs,h,dk,Lk]  v:[bs,h,Lk,dv]
    prev:[bs,h,Lq,Lk] | None,  key_padding_mask:[bs,Lk] bool | None,
    attn_mask:[1,Lq,Lk] (bool or additive float) | None.

    Returns (out, attn) or (out, attn, scores) when res_attention=True.
    """
    bs, h, Lq, dk = q.shape
    Lk = k.shape[-1]
    dv = v.shape[-1]
    B = bs * h

    qf = q.reshape(B, Lq, dk)
    kf = k.reshape(B, dk, Lk)
    vf = v.reshape(B, Lk, dv)
    bias = _build_bias(bs, h, Lq, Lk, prev, attn_mask, key_padding_mask)
    has_bias = bias is not None

    TQ = _pick_tq(Lq)
    itemsize = jnp.dtype(q.dtype).itemsize
    # rough per-(bs*head)-slice working set per grid step (I/O + f32 temps)
    per_slice = (TQ * dk + dk * Lk + Lk * dv + TQ * dv + TQ * Lk) * itemsize
    per_slice += TQ * Lk * 4 * (3 + int(has_bias) + int(res_attention))
    TB = _pick_tb(B, per_slice)

    grid = (B // TB, Lq // TQ)
    scale_arr = jnp.asarray(scale, jnp.float32).reshape(1)

    in_specs = [
        pl.BlockSpec(memory_space=pltpu.MemorySpace.SMEM),        # scale
        pl.BlockSpec((TB, TQ, dk), lambda b, qb: (b, qb, 0)),     # q
        pl.BlockSpec((TB, dk, Lk), lambda b, qb: (b, 0, 0)),      # k (held across qb)
        pl.BlockSpec((TB, Lk, dv), lambda b, qb: (b, 0, 0)),      # v (held across qb)
    ]
    inputs = [scale_arr, qf, kf, vf]
    if has_bias:
        in_specs.append(pl.BlockSpec((TB, TQ, Lk), lambda b, qb: (b, qb, 0)))
        inputs.append(bias)

    out_shapes = [
        jax.ShapeDtypeStruct((B, Lq, dv), q.dtype),               # output
        jax.ShapeDtypeStruct((B, Lq, Lk), q.dtype),               # attn weights
    ]
    out_specs = [
        pl.BlockSpec((TB, TQ, dv), lambda b, qb: (b, qb, 0)),
        pl.BlockSpec((TB, TQ, Lk), lambda b, qb: (b, qb, 0)),
    ]
    if res_attention:
        out_shapes.append(jax.ShapeDtypeStruct((B, Lq, Lk), q.dtype))
        out_specs.append(pl.BlockSpec((TB, TQ, Lk), lambda b, qb: (b, qb, 0)))

    # explicit scoped-VMEM limit sized to the double-buffered working set,
    # clamped to stay within every generation's physical VMEM (v7x: 64 MiB)
    step_bytes = 2 * TB * per_slice
    vmem_limit = int(min(max(2 * step_bytes + (4 << 20), 32 << 20), 64 << 20))

    kernel = functools.partial(
        _sdpa_kernel, has_bias=has_bias, want_scores=res_attention)

    results = pl.pallas_call(
        kernel,
        out_shape=tuple(out_shapes),
        grid_spec=pltpu.PrefetchScalarGridSpec(
            num_scalar_prefetch=0,
            grid=grid,
            in_specs=in_specs,
            out_specs=out_specs,
        ),
        compiler_params=pltpu.CompilerParams(
            dimension_semantics=("parallel", "parallel"),
            vmem_limit_bytes=vmem_limit,
        ),
    )(*inputs)

    out = results[0].reshape(bs, h, Lq, dv)
    attn = results[1].reshape(bs, h, Lq, Lk)
    if res_attention:
        scores = results[2].reshape(bs, h, Lq, Lk)
        return out, attn, scores
    return out, attn


if __name__ == "__main__":
    # Module config: d_model=32, n_heads=4 -> head_dim = d_k = d_v = 8
    bs, n_heads, d_model = 2, 4, 32
    head_dim = d_model // n_heads
    q_len = seq_len = 8

    # scale = head_dim ** -0.5 (lsa=False -> non-trainable constant)
    scale = head_dim ** (-0.5)

    key = jax.random.PRNGKey(0)
    kq, kk, kv, kp, km = jax.random.split(key, 5)
    q = jax.random.normal(kq, (bs, n_heads, q_len, head_dim), jnp.float32)
    k = jax.random.normal(kk, (bs, n_heads, head_dim, seq_len), jnp.float32)
    v = jax.random.normal(kv, (bs, n_heads, seq_len, head_dim), jnp.float32)
    prev = jax.random.normal(kp, (bs, n_heads, q_len, seq_len), jnp.float32)

    scores_ref = jnp.einsum("bhqd,bhds->bhqs", q, k) * scale

    # ---- default path: prev=None, res_attention=False (no bias DMA,
    #      no scores writeback)
    out, attn = scaled_dot_product_attention(q, k, v, scale)
    jax.block_until_ready((out, attn))

    attn_ref = jax.nn.softmax(scores_ref, axis=-1)
    out_ref = jnp.einsum("bhqs,bhsd->bhqd", attn_ref, v)
    # tolerance loosened for pl.reciprocal(approx=True) in the softmax denom
    assert jnp.allclose(attn, attn_ref, atol=2e-3, rtol=2e-3)
    assert jnp.allclose(out, out_ref, atol=2e-3, rtol=2e-3)

    # ---- residual-attention path: prev given, scores returned
    out2, attn2, scores2 = scaled_dot_product_attention(
        q, k, v, scale, prev=prev, res_attention=True)
    jax.block_until_ready((out2, attn2, scores2))

    scores2_ref = scores_ref + prev
    attn2_ref = jax.nn.softmax(scores2_ref, axis=-1)
    out2_ref = jnp.einsum("bhqs,bhsd->bhqd", attn2_ref, v)
    assert jnp.allclose(scores2, scores2_ref, atol=1e-4, rtol=1e-4)
    assert jnp.allclose(attn2, attn2_ref, atol=2e-3, rtol=2e-3)
    assert jnp.allclose(out2, out2_ref, atol=2e-3, rtol=2e-3)

    # ---- masked path: additive float attn_mask + boolean key_padding_mask
    attn_mask = 0.5 * jax.random.normal(km, (1, q_len, seq_len), jnp.float32)
    key_padding_mask = jnp.zeros((bs, seq_len), jnp.bool_).at[:, -2:].set(True)

    out3, attn3 = scaled_dot_product_attention(
        q, k, v, scale, attn_mask=attn_mask, key_padding_mask=key_padding_mask)
    jax.block_until_ready((out3, attn3))

    scores3_ref = scores_ref + attn_mask
    scores3_ref = jnp.where(key_padding_mask[:, None, None, :], -jnp.inf, scores3_ref)
    attn3_ref = jax.nn.softmax(scores3_ref, axis=-1)
    out3_ref = jnp.einsum("bhqs,bhsd->bhqd", attn3_ref, v)
    assert jnp.allclose(attn3, attn3_ref, atol=2e-3, rtol=2e-3)
    assert jnp.allclose(out3, out3_ref, atol=2e-3, rtol=2e-3)

    print("KERNEL_OK")
</pallas_src>

<mosaic_0001>
module attributes {stable_mosaic.version = 11 : i64} {
  func.func @_sdpa_kernel(%arg0: i32, %arg1: i32, %arg2: memref<1xf32, #tpu.memory_space<smem>>, %arg3: memref<4x8x8xf32, #tpu.memory_space<vmem>>, %arg4: memref<4x8x8xf32, #tpu.memory_space<vmem>>, %arg5: memref<4x8x8xf32, #tpu.memory_space<vmem>>, %arg6: memref<4x8x8xf32, #tpu.memory_space<vmem>>, %arg7: memref<4x8x8xf32, #tpu.memory_space<vmem>>) attributes {dimension_semantics = [#tpu.dimension_semantics<parallel>, #tpu.dimension_semantics<parallel>], iteration_bounds = array<i64: 2, 1>, scalar_prefetch = 0 : i64, scratch_operands = 0 : i64, tpu.core_type = #tpu.core_type<tc>, window_params = [{transform_indices = @transform_0, window_bounds = array<i64: 1>}, {transform_indices = @transform_1, window_bounds = array<i64: 4, 8, 8>}, {transform_indices = @transform_2, window_bounds = array<i64: 4, 8, 8>}, {transform_indices = @transform_3, window_bounds = array<i64: 4, 8, 8>}, {transform_indices = @transform_4, window_bounds = array<i64: 4, 8, 8>}, {transform_indices = @transform_5, window_bounds = array<i64: 4, 8, 8>}]} {
    %c0 = arith.constant 0 : index
    %0 = memref.load %arg2[%c0] : memref<1xf32, #tpu.memory_space<smem>>
    %c0_0 = arith.constant 0 : index
    %c0_1 = arith.constant 0 : index
    %c0_2 = arith.constant 0 : index
    %1 = vector.load %arg3[%c0_0, %c0_1, %c0_2] : memref<4x8x8xf32, #tpu.memory_space<vmem>>, vector<4x8x8xf32>
    %2 = vector.broadcast %0 : f32 to vector<4x8x8xf32>
    %3 = arith.mulf %1, %2 : vector<4x8x8xf32>
    %c0_3 = arith.constant 0 : index
    %c0_4 = arith.constant 0 : index
    %c0_5 = arith.constant 0 : index
    %4 = vector.load %arg4[%c0_3, %c0_4, %c0_5] : memref<4x8x8xf32, #tpu.memory_space<vmem>>, vector<4x8x8xf32>
    %c0_6 = arith.constant 0 : index
    %c0_7 = arith.constant 0 : index
    %c0_8 = arith.constant 0 : index
    %5 = vector.load %arg5[%c0_6, %c0_7, %c0_8] : memref<4x8x8xf32, #tpu.memory_space<vmem>>, vector<4x8x8xf32>
    "tpu.trace_start"() <{level = 10 : i32, message = "bqd,bdk->bqk"}> : () -> ()
    %cst = arith.constant dense<0.000000e+00> : vector<4x8x8xf32>
    %6 = tpu.matmul %3, %4, %cst {dimension_numbers = #tpu.dot_dimension_numbers<[2], [1], [1], [2], [0, 0, 0, 1, 1, 2], [0], [0]>} : vector<4x8x8xf32>, vector<4x8x8xf32>, vector<4x8x8xf32> -> vector<4x8x8xf32>
    "tpu.trace_stop"() : () -> ()
    %cst_9 = arith.constant dense<0xFF800000> : vector<4x8xf32>
    %7 = vector.multi_reduction <maximumf>, %6, %cst_9 [2] : vector<4x8x8xf32> to vector<4x8xf32>
    %8 = vector.shape_cast %7 : vector<4x8xf32> to vector<4x8x1xf32>
    %9 = vector.broadcast %8 : vector<4x8x1xf32> to vector<4x8x8xf32>
    %10 = arith.subf %6, %9 : vector<4x8x8xf32>
    %11 = math.exp %10 : vector<4x8x8xf32>
    %cst_10 = arith.constant dense<0.000000e+00> : vector<4x8xf32>
    %12 = vector.multi_reduction <add>, %11, %cst_10 [2] : vector<4x8x8xf32> to vector<4x8xf32>
    %13 = vector.shape_cast %12 : vector<4x8xf32> to vector<4x8x1xf32>
    %14 = tpu.reciprocal %13 {approx = true} : vector<4x8x1xf32> -> vector<4x8x1xf32>
    %15 = vector.broadcast %14 : vector<4x8x1xf32> to vector<4x8x8xf32>
    %16 = arith.mulf %11, %15 : vector<4x8x8xf32>
    "tpu.trace_start"() <{level = 10 : i32, message = "bqk,bkd->bqd"}> : () -> ()
    %cst_11 = arith.constant dense<0.000000e+00> : vector<4x8x8xf32>
    %17 = tpu.matmul %16, %5, %cst_11 {dimension_numbers = #tpu.dot_dimension_numbers<[2], [1], [1], [2], [0, 0, 0, 1, 1, 2], [0], [0]>} : vector<4x8x8xf32>, vector<4x8x8xf32>, vector<4x8x8xf32> -> vector<4x8x8xf32>
    "tpu.trace_stop"() : () -> ()
    %c0_12 = arith.constant 0 : index
    %c0_13 = arith.constant 0 : index
    %c0_14 = arith.constant 0 : index
    %18 = vector.load %arg7[%c0_12, %c0_13, %c0_14] : memref<4x8x8xf32, #tpu.memory_space<vmem>>, vector<4x8x8xf32>
    tpu.vector_store %arg7[%c0_12, %c0_13, %c0_14], %16 {strides = array<i32>} : memref<4x8x8xf32, #tpu.memory_space<vmem>>, vector<4x8x8xf32>,
    %c0_15 = arith.constant 0 : index
    %c0_16 = arith.constant 0 : index
    %c0_17 = arith.constant 0 : index
    %19 = vector.load %arg6[%c0_15, %c0_16, %c0_17] : memref<4x8x8xf32, #tpu.memory_space<vmem>>, vector<4x8x8xf32>
    tpu.vector_store %arg6[%c0_15, %c0_16, %c0_17], %17 {strides = array<i32>} : memref<4x8x8xf32, #tpu.memory_space<vmem>>, vector<4x8x8xf32>,
    return
  }
  func.func @transform_0(%arg0: i32, %arg1: i32) -> i32 {
    %c0_i32 = arith.constant 0 : i32
    %c0_i32_0 = arith.constant 0 : i32
    return %c0_i32 : i32
  }
  func.func @transform_1(%arg0: i32, %arg1: i32) -> (i32, i32, i32) {
    %c0_i32 = arith.constant 0 : i32
    %c0_i32_0 = arith.constant 0 : i32
    return %arg0, %arg1, %c0_i32 : i32, i32, i32
  }
  func.func @transform_2(%arg0: i32, %arg1: i32) -> (i32, i32, i32) {
    %c0_i32 = arith.constant 0 : i32
    %c0_i32_0 = arith.constant 0 : i32
    %c0_i32_1 = arith.constant 0 : i32
    return %arg0, %c0_i32, %c0_i32_0 : i32, i32, i32
  }
  func.func @transform_3(%arg0: i32, %arg1: i32) -> (i32, i32, i32) {
    %c0_i32 = arith.constant 0 : i32
    %c0_i32_0 = arith.constant 0 : i32
    %c0_i32_1 = arith.constant 0 : i32
    return %arg0, %c0_i32, %c0_i32_0 : i32, i32, i32
  }
  func.func @transform_4(%arg0: i32, %arg1: i32) -> (i32, i32, i32) {
    %c0_i32 = arith.constant 0 : i32
    %c0_i32_0 = arith.constant 0 : i32
    return %arg0, %arg1, %c0_i32 : i32, i32, i32
  }
  func.func @transform_5(%arg0: i32, %arg1: i32) -> (i32, i32, i32) {
    %c0_i32 = arith.constant 0 : i32
    %c0_i32_0 = arith.constant 0 : i32
    return %arg0, %arg1, %c0_i32 : i32, i32, i32
  }
}

</mosaic_0001>

<llo_original>
// kernel: scaled_dot_product_attention.1
$region0: #{scaled_dot_product_attention.1}
  #allocation0 [shape = 'u32[]', space=smem, size = 0x4, offset = 0x4, fixed_abs, tag = 'smem constant byte address 0x4 - core index']
  #allocation1 [shape = 'u32[144,128]{1,0:T(1,128)}', space=vmem, size = 0x12000, scoped, tag = 'internal scratch']
  #allocation2 [shape = 'f32[1]{0:T(128)S(6)}', space=smem, size = 0x200, scoped, tag = 'scoped memory for scaled_dot_product_attention.1']
  %s0 = inlined_call_operand.<no memory space> [shape: f32[1], index: 0, kind: input, shape index: {}]
  %s1 = inlined_call_operand.hbm [shape: f32[8,8,8], index: 1, kind: input, shape index: {}]
  %s2 = inlined_call_operand.hbm [shape: f32[8,8,8], index: 2, kind: input, shape index: {}]
  %s3 = inlined_call_operand.hbm [shape: f32[8,8,8], index: 3, kind: input, shape index: {}]
  %s4 = inlined_call_operand.hbm [shape: f32[8,8,8], index: 4, kind: output, shape index: {0}]
  %s5 = inlined_call_operand.hbm [shape: f32[8,8,8], index: 5, kind: output, shape index: {1}]
  %6 = xla_tuple %s4, %s5
  %s7 = sld [smem:[#allocation0]]
  $region69: #{scaled_dot_product_attention.1} parent=0
    _
  %s9 = ssub.s32 1, %s7
  %s10 = scalar_select 0, %s9, %s7
  %11 = sst [smem:[#allocation2]] %s0
  $region1: #{scaled_dot_product_attention.1} parent=0
    #allocation3 [shape = 'u8[32768]{0}', space=vmem, size = 0x8000, scoped, tag = 'input window, operand 1']
    #allocation4 [shape = 's32[2]{0}', space=sflag, size = 0x8, scoped, tag = 'scoped memory for scaled_dot_product_attention.1']
    #allocation5 [shape = 's32[2]{0}', space=sflag, size = 0x8, scoped, tag = 'scoped memory for scaled_dot_product_attention.1']
    #allocation6 [shape = 'u8[32768]{0}', space=vmem, size = 0x8000, scoped, tag = 'input window, operand 2']
    #allocation7 [shape = 's32[2]{0}', space=sflag, size = 0x8, scoped, tag = 'scoped memory for scaled_dot_product_attention.1']
    #allocation8 [shape = 'u8[32768]{0}', space=vmem, size = 0x8000, scoped, tag = 'input window, operand 3']
    #allocation9 [shape = 'u8[32768]{0}', space=vmem, size = 0x8000, scoped, tag = 'output window, operand 0']
    #allocation10 [shape = 'u8[32768]{0}', space=vmem, size = 0x8000, scoped, tag = 'output window, operand 1']
    #allocation11 [shape = 's32[2]{0}', space=sflag, size = 0x8, scoped, tag = 'scoped memory for scaled_dot_product_attention.1']
    %12 = vsyncpa [#allocation4], 0
    %s13 = scalar_lea.sflag [#allocation4], 1
    %14 = vsyncpa %s13, 0
    %15 = vsyncpa [#allocation7], 0
    %s16 = scalar_lea.sflag [#allocation7], 1
    %17 = vsyncpa %s16, 0
    %18 = vsyncpa [#allocation5], 0
    %s19 = scalar_lea.sflag [#allocation5], 1
    %20 = vsyncpa %s19, 0
    %21 = vsyncpa [#allocation11], 0
    %s22 = scalar_lea.sflag [#allocation11], 1
    %23 = vsyncpa %s22, 0
    loop: start=0, step=1, limit=4
    $region2: #{scaled_dot_product_attention.1} parent=1 // loop_pre_header
      _
    $region3: #{scaled_dot_product_attention.1} parent=1 // loop_header
      %s25 = sphi 0, %s29
      %p26 = scmp.ge.s32.totalorder %s25, 4
      %s32 = sphi 0, %s44
      %s33 = sphi 0, %s40
      %s34 = sphi 0, %s32
      %s35 = sphi 0, %s33
      %s36 = sphi 0, %s34
      %s37 = sphi 0, %s35
      %s45 = sphi 0, %s45
      %s47 = sphi 0, %s45
      %s48 = sphi 0, %s47
      %s62 = sphi 0, %s48
      %s70 = sphi 0, %s72
      %s73 = sphi 0, %s70
      %s74 = sphi 0, %s73
      %s90 = sphi 0, %s74
      %s96 = sphi 0, %s98
      %s99 = sphi 0, %s96
      %s100 = sphi 0, %s99
      %s116 = sphi 0, %s100
      %s122 = sphi 0, %s124
      %s125 = sphi 0, %s122
      %s126 = sphi 0, %s125
      %s142 = sphi 0, %s126
      %s150 = sphi 0, %s152
      %s153 = sphi 0, %s150
      %s154 = sphi 0, %s153
      %s170 = sphi 0, %s154
      %s178 = sphi 0, %s180
      %s181 = sphi 0, %s178
      %s182 = sphi 0, %s181
      %s198 = sphi 0, %s182
    $region4: #{scaled_dot_product_attention.1} parent=1 // loop_header_branch
      %28 = sbr.rel (%p26) target = $region8
    $region5: #{scaled_dot_product_attention.1} parent=1 // loop_body
      %s30 = ssub.s32 %s25, 1
      %s31 = ssub.s32 %s25, 2
      %s38 = sadd.s32 1, %s33
      %p39 = scmp.ge.s32.totalorder %s38, 1
      %s40 = scalar_select %p39, 0, %s38
      %s41 = sadd.s32 1, %s32
      %s42 = scalar_select %p39, %s41, %s32
      %p43 = scmp.ge.s32.totalorder %s42, 2
      %s44 = scalar_select %p43, 0, %s42
      %s46 = sadd.s32 %s45, 1
      %p49 = scmp.eq.s32.totalorder %s25, 1
      %p50 = scmp.ne.s32.totalorder %s45, %s47
      %p51 = scmp.eq.s32.totalorder %s25, 0
      %p52 = por %p50, %p51
      %p53 = scmp.ne.s32.totalorder %s45, %s47
      %p54 = scmp.eq.s32.totalorder %s30, 1
      %p55 = por %p53, %p54
      %p56 = scmp.ne.s32.totalorder %s47, %s48
      %p57 = scmp.eq.s32.totalorder %s30, 0
      %p58 = por %p56, %p57
      %p59 = scmp.ne.s32.totalorder %s47, %s48
      %p60 = scmp.eq.s32.totalorder %s31, 1
      %p61 = por %p59, %p60
      %p63 = scmp.ne.s32.totalorder %s48, %s62
      %p64 = scmp.eq.s32.totalorder %s31, 0
      %p65 = por %p63, %p64
      %s66 = ssub.s32 %s32, %s44
      %s67 = ssub.s32 %s33, %s40
      %s68 = sor.u32 %s66, %s67
      %p69 = scmp.eq.s32.totalorder %s68, 0
      %s71 = sadd.s32 %s70, 1
      %s72 = scalar_select %p69, %s70, %s71
      %p75 = pneg %p69
      %p76 = scmp.eq.s32.totalorder %s25, 1
      %p77 = por %p75, %p76
      %p78 = scmp.ne.s32.totalorder %s70, %s73
      %p79 = scmp.eq.s32.totalorder %s25, 0
      %p80 = por %p78, %p79
      %p81 = scmp.ne.s32.totalorder %s70, %s73
      %p82 = scmp.eq.s32.totalorder %s30, 1
      %p83 = por %p81, %p82
      %p84 = scmp.ne.s32.totalorder %s73, %s74
      %p85 = scmp.eq.s32.totalorder %s30, 0
      %p86 = por %p84, %p85
      %p87 = scmp.ne.s32.totalorder %s73, %s74
      %p88 = scmp.eq.s32.totalorder %s31, 1
      %p89 = por %p87, %p88
      %p91 = scmp.ne.s32.totalorder %s74, %s90
      %p92 = scmp.eq.s32.totalorder %s31, 0
      %p93 = por %p91, %p92
      %s94 = ssub.s32 %s32, %s44
      %p95 = scmp.eq.s32.totalorder %s94, 0
      %s97 = sadd.s32 %s96, 1
      %s98 = scalar_select %p95, %s96, %s97
      %p101 = pneg %p95
      %p102 = scmp.eq.s32.totalorder %s25, 1
      %p103 = por %p101, %p102
      %p104 = scmp.ne.s32.totalorder %s96, %s99
      %p105 = scmp.eq.s32.totalorder %s25, 0
      %p106 = por %p104, %p105
      %p107 = scmp.ne.s32.totalorder %s96, %s99
      %p108 = scmp.eq.s32.totalorder %s30, 1
      %p109 = por %p107, %p108
      %p110 = scmp.ne.s32.totalorder %s99, %s100
      %p111 = scmp.eq.s32.totalorder %s30, 0
      %p112 = por %p110, %p111
      %p113 = scmp.ne.s32.totalorder %s99, %s100
      %p114 = scmp.eq.s32.totalorder %s31, 1
      %p115 = por %p113, %p114
      %p117 = scmp.ne.s32.totalorder %s100, %s116
      %p118 = scmp.eq.s32.totalorder %s31, 0
      %p119 = por %p117, %p118
      %s120 = ssub.s32 %s32, %s44
      %p121 = scmp.eq.s32.totalorder %s120, 0
      %s123 = sadd.s32 %s122, 1
      %s124 = scalar_select %p121, %s122, %s123
      %p127 = pneg %p121
      %p128 = scmp.eq.s32.totalorder %s25, 1
      %p129 = por %p127, %p128
      %p130 = scmp.ne.s32.totalorder %s122, %s125
      %p131 = scmp.eq.s32.totalorder %s25, 0
      %p132 = por %p130, %p131
      %p133 = scmp.ne.s32.totalorder %s122, %s125
      %p134 = scmp.eq.s32.totalorder %s30, 1
      %p135 = por %p133, %p134
      %p136 = scmp.ne.s32.totalorder %s125, %s126
      %p137 = scmp.eq.s32.totalorder %s30, 0
      %p138 = por %p136, %p137
      %p139 = scmp.ne.s32.totalorder %s125, %s126
      %p140 = scmp.eq.s32.totalorder %s31, 1
      %p141 = por %p139, %p140
      %p143 = scmp.ne.s32.totalorder %s126, %s142
      %p144 = scmp.eq.s32.totalorder %s31, 0
      %p145 = por %p143, %p144
      %s146 = ssub.s32 %s32, %s44
      %s147 = ssub.s32 %s33, %s40
      %s148 = sor.u32 %s146, %s147
      %p149 = scmp.eq.s32.totalorder %s148, 0
      %s151 = sadd.s32 %s150, 1
      %s152 = scalar_select %p149, %s150, %s151
      %p155 = pneg %p149
      %p156 = scmp.eq.s32.totalorder %s25, 1
      %p157 = por %p155, %p156
      %p158 = scmp.ne.s32.totalorder %s150, %s153
      %p159 = scmp.eq.s32.totalorder %s25, 0
      %p160 = por %p158, %p159
      %p161 = scmp.ne.s32.totalorder %s150, %s153
      %p162 = scmp.eq.s32.totalorder %s30, 1
      %p163 = por %p161, %p162
      %p164 = scmp.ne.s32.totalorder %s153, %s154
      %p165 = scmp.eq.s32.totalorder %s30, 0
      %p166 = por %p164, %p165
      %p167 = scmp.ne.s32.totalorder %s153, %s154
      %p168 = scmp.eq.s32.totalorder %s31, 1
      %p169 = por %p167, %p168
      %p171 = scmp.ne.s32.totalorder %s154, %s170
      %p172 = scmp.eq.s32.totalorder %s31, 0
      %p173 = por %p171, %p172
      %s174 = ssub.s32 %s32, %s44
      %s175 = ssub.s32 %s33, %s40
      %s176 = sor.u32 %s174, %s175
      %p177 = scmp.eq.s32.totalorder %s176, 0
      %s179 = sadd.s32 %s178, 1
      %s180 = scalar_select %p177, %s178, %s179
      %p183 = pneg %p177
      %p184 = scmp.eq.s32.totalorder %s25, 1
      %p185 = por %p183, %p184
      %p186 = scmp.ne.s32.totalorder %s178, %s181
      %p187 = scmp.eq.s32.totalorder %s25, 0
      %p188 = por %p186, %p187
      %p189 = scmp.ne.s32.totalorder %s178, %s181
      %p190 = scmp.eq.s32.totalorder %s30, 1
      %p191 = por %p189, %p190
      %p192 = scmp.ne.s32.totalorder %s181, %s182
      %p193 = scmp.eq.s32.totalorder %s30, 0
      %p194 = por %p192, %p193
      %p195 = scmp.ne.s32.totalorder %s181, %s182
      %p196 = scmp.eq.s32.totalorder %s31, 1
      %p197 = por %p195, %p196
      %p199 = scmp.ne.s32.totalorder %s182, %s198
      %p200 = scmp.eq.s32.totalorder %s31, 0
      %p201 = por %p199, %p200
      %p202 = scmp.le.s32.totalorder 1, %s25
      %p203 = scmp.lt.s32.totalorder %s25, 3
      %p204 = pnand %p202, %p203
      %p205 = pneg %p204
      // Predicated region
      $region9: #{scaled_dot_product_attention.1} parent=5 // pred_check
        _
      $region10: #{scaled_dot_product_attention.1} parent=5 // pred_check_branch
        %207 = sbr.rel (%p204) target = $region12
      $region11: #{scaled_dot_product_attention.1} parent=5 // pred_region
        %s208 = ssub.s32 %s25, 1
        // Predicated region
        $region13: #{scaled_dot_product_attention.1} parent=11 // pred_check
          %p209 = pneg %p58
        $region14: #{scaled_dot_product_attention.1} parent=11 // pred_check_branch
          %211 = sbr.rel (%p209) target = $region16
        $region15: #{scaled_dot_product_attention.1} parent=11 // pred_region
          _
        $region16: #{scaled_dot_product_attention.1} parent=11 // pred_fallthru
          _
      $region12: #{scaled_dot_product_attention.1} parent=5 // pred_fallthru
        _
      %p212 = scmp.lt.s32.totalorder %s25, 2
      // Predicated region
      $region17: #{scaled_dot_product_attention.1} parent=5 // pred_check
        %p213 = pneg %p212
      $region18: #{scaled_dot_product_attention.1} parent=5 // pred_check_branch
        %215 = sbr.rel (%p213) target = $region20
      $region19: #{scaled_dot_product_attention.1} parent=5 // pred_region
        // Predicated region
        $region21: #{scaled_dot_product_attention.1} parent=19 // pred_check
          %p216 = pneg %p80
        $region22: #{scaled_dot_product_attention.1} parent=19 // pred_check_branch
          %218 = sbr.rel (%p216) target = $region24
        $region23: #{scaled_dot_product_attention.1} parent=19 // pred_region
          %s219 = sand.u32 %s70, 1
          %s220 = scalar_lea.sflag [#allocation4], %s219
          %s221 = sand.u32 %s70, 1
          %s222 = smul.addr %s221, 32
          %s223 = scalar_lea.vmem [#allocation3], %s222
          %s224 = smul.u32 4, %s32
          %s226 = ssub.s32 512, 512
          %227 = vsyncadd %s220, %s226
          %s228 = sadd.s32 %s33, %s224
          %s229 = smul.addr %s228, 128
          %s230 = scalar_lea.hbm %s1, %s229
          %s231 = sshll.u32 %s223, 4
          %s232 = int_to_ptr.vmem [resolvable:$true] %s231
          %237 = dma.hbm_to_vmem [thread:$0]  %s230, 512, %s232, %s220, 128, 128, 8
        $region24: #{scaled_dot_product_attention.1} parent=19 // pred_fallthru
          _
        // Predicated region
        $region25: #{scaled_dot_product_attention.1} parent=19 // pred_check
          %p238 = pneg %p106
        $region26: #{scaled_dot_product_attention.1} parent=19 // pred_check_branch
          %240 = sbr.rel (%p238) target = $region28
        $region27: #{scaled_dot_product_attention.1} parent=19 // pred_region
          %s241 = sand.u32 %s25, 1
          %s242 = scalar_lea.sflag [#allocation7], %s241
          %s243 = sand.u32 %s96, 1
          %s244 = smul.addr %s243, 32
          %s245 = scalar_lea.vmem [#allocation6], %s244
          %s246 = smul.u32 4, %s32
          %s248 = ssub.s32 512, 512
          %249 = vsyncadd %s242, %s248
          %s250 = smul.addr %s246, 128
          %s251 = scalar_lea.hbm %s2, %s250
          %s252 = sshll.u32 %s245, 4
          %s253 = int_to_ptr.vmem [resolvable:$true] %s252
          %258 = dma.hbm_to_vmem [thread:$0]  %s251, 512, %s253, %s242, 128, 128, 8
        $region28: #{scaled_dot_product_attention.1} parent=19 // pred_fallthru
          _
        // Predicated region
        $region29: #{scaled_dot_product_attention.1} parent=19 // pred_check
          %p259 = pneg %p132
        $region30: #{scaled_dot_product_attention.1} parent=19 // pred_check_branch
          %261 = sbr.rel (%p259) target = $region32
        $region31: #{scaled_dot_product_attention.1} parent=19 // pred_region
          %s262 = sand.u32 %s25, 1
          %s263 = scalar_lea.sflag [#allocation7], %s262
          %s264 = sand.u32 %s122, 1
          %s265 = smul.addr %s264, 32
          %s266 = scalar_lea.vmem [#allocation8], %s265
          %s267 = smul.u32 4, %s32
          %s269 = ssub.s32 512, 512
          %270 = vsyncadd %s263, %s269
          %s271 = smul.addr %s267, 128
          %s272 = scalar_lea.hbm %s3, %s271
          %s273 = sshll.u32 %s266, 4
          %s274 = int_to_ptr.vmem [resolvable:$true] %s273
          %279 = dma.hbm_to_vmem [thread:$0]  %s272, 512, %s274, %s263, 128, 128, 8
        $region32: #{scaled_dot_product_attention.1} parent=19 // pred_fallthru
          _
      $region20: #{scaled_dot_product_attention.1} parent=5 // pred_fallthru
        _
      %p280 = scmp.le.s32.totalorder 1, %s25
      %p281 = scmp.lt.s32.totalorder %s25, 3
      %p282 = pnand %p280, %p281
      %p283 = pneg %p282
      // Predicated region
      $region33: #{scaled_dot_product_attention.1} parent=5 // pred_check
        _
      $region34: #{scaled_dot_product_attention.1} parent=5 // pred_check_branch
        %285 = sbr.rel (%p282) target = $region36
      $region35: #{scaled_dot_product_attention.1} parent=5 // pred_region
        %s286 = ssub.s32 %s25, 1
        %s287 = sand.u32 %s73, 1
        %s288 = scalar_lea.sflag [#allocation4], %s287
        %s289 = sand.u32 %s73, 1
        %s290 = smul.addr %s289, 32
        %s291 = scalar_lea.vmem [#allocation3], %s290
        // Predicated region
        $region37: #{scaled_dot_product_attention.1} parent=35 // pred_check
          %p292 = pneg %p86
        $region38: #{scaled_dot_product_attention.1} parent=35 // pred_check_branch
          %294 = sbr.rel (%p292) target = $region40
        $region39: #{scaled_dot_product_attention.1} parent=35 // pred_region
          %295 = dma.done %s288, 512
        $region40: #{scaled_dot_product_attention.1} parent=35 // pred_fallthru
          _
        %s296 = sand.u32 %s30, 1
        %s297 = scalar_lea.sflag [#allocation7], %s296
        %s298 = sand.u32 %s99, 1
        %s299 = smul.addr %s298, 32
        %s300 = scalar_lea.vmem [#allocation6], %s299
        // Predicated region
        $region41: #{scaled_dot_product_attention.1} parent=35 // pred_check
          %p301 = pneg %p112
        $region42: #{scaled_dot_product_attention.1} parent=35 // pred_check_branch
          %303 = sbr.rel (%p301) target = $region44
        $region43: #{scaled_dot_product_attention.1} parent=35 // pred_region
          %304 = dma.done %s297, 512
        $region44: #{scaled_dot_product_attention.1} parent=35 // pred_fallthru
          _
        %s305 = sand.u32 %s30, 1
        %s306 = scalar_lea.sflag [#allocation7], %s305
        %s307 = sand.u32 %s125, 1
        %s308 = smul.addr %s307, 32
        %s309 = scalar_lea.vmem [#allocation8], %s308
        // Predicated region
        $region45: #{scaled_dot_product_attention.1} parent=35 // pred_check
          %p310 = pneg %p138
        $region46: #{scaled_dot_product_attention.1} parent=35 // pred_check_branch
          %312 = sbr.rel (%p310) target = $region48
        $region47: #{scaled_dot_product_attention.1} parent=35 // pred_region
          %313 = dma.done %s306, 512
        $region48: #{scaled_dot_product_attention.1} parent=35 // pred_fallthru
          _
        %p314 = pneg %p58
        %p315 = pneg %p55
        %s316 = sand.u32 %s73, 1
        %s317 = scalar_lea.sflag [#allocation4], %s316
        %s318 = sand.u32 %s73, 1
        %s319 = smul.addr %s318, 32
        %s320 = scalar_lea.vmem [#allocation3], %s319
        %p321 = pneg %p86
        %p322 = pneg %p83
        %s323 = sand.u32 %s30, 1
        %s324 = scalar_lea.sflag [#allocation7], %s323
        %s325 = sand.u32 %s99, 1
        %s326 = smul.addr %s325, 32
        %s327 = scalar_lea.vmem [#allocation6], %s326
        %p328 = pneg %p112
        %p329 = pneg %p109
        %s330 = sand.u32 %s30, 1
        %s331 = scalar_lea.sflag [#allocation7], %s330
        %s332 = sand.u32 %s125, 1
        %s333 = smul.addr %s332, 32
        %s334 = scalar_lea.vmem [#allocation8], %s333
        %p335 = pneg %p138
        %p336 = pneg %p135
        %p337 = pneg %p166
        %p338 = pneg %p163
        %s339 = sand.u32 %s153, 1
        %s340 = scalar_lea.sflag [#allocation5], %s339
        %s341 = sand.u32 %s153, 1
        %s342 = smul.addr %s341, 32
        %s343 = scalar_lea.vmem [#allocation9], %s342
        %p344 = pneg %p194
        %p345 = pneg %p191
        %s346 = sand.u32 %s181, 1
        %s347 = scalar_lea.sflag [#allocation11], %s346
        %s348 = sand.u32 %s181, 1
        %s349 = smul.addr %s348, 32
        %s350 = scalar_lea.vmem [#allocation10], %s349
        %s351 = smul.u32 4, %s34
        %s352 = smul.u32 4, %s34
        %s353 = smul.u32 4, %s34
        %s354 = smul.u32 4, %s34
        %s355 = smul.u32 4, %s34
        %s356 = sld [smem:[#allocation2]]
        %v357 = vld [vmem:[%s291] sm:$0xff]
        %v358 = vld [vmem:[%s291 + $0x8] sm:$0xff]
        %v359 = vld [vmem:[%s291 + $0x10] sm:$0xff]
        %v360 = vld [vmem:[%s291 + $0x18] sm:$0xff]
        %v361 = vstv %s356
        %v362 = vmul.f32 %v357, %v361
        %v363 = vmul.f32 %v358, %v361
        %v364 = vmul.f32 %v359, %v361
        %v365 = vmul.f32 %v360, %v361
        %v366 = vld [vmem:[%s300] sm:$0xff]
        %v367 = vld [vmem:[%s300 + $0x8] sm:$0xff]
        %v368 = vld [vmem:[%s300 + $0x10] sm:$0xff]
        %v369 = vld [vmem:[%s300 + $0x18] sm:$0xff]
        %v370 = vld [vmem:[%s309] sm:$0xff]
        %v371 = vld [vmem:[%s309 + $0x8] sm:$0xff]
        %v372 = vld [vmem:[%s309 + $0x10] sm:$0xff]
        %v373 = vld [vmem:[%s309 + $0x18] sm:$0xff]
        %vm374 = vcmask 64512
        %v376 = vsel %vm374, %v362, 0
        %378 = vmatprep.subr.mxu0 0.0
        %379 = vmatpush1.msra.mxu0 %v366
        %380 = vmatprep.subr.mxu0 0.0
        %381 = vmatpush1.msra.mxu0 0.0
        %382 = vmatprep.subr.mxu0 0.0
        %383 = vmatpush1.msra.mxu0 0.0
        %384 = vmatprep.subr.mxu0 0.0
        %385 = vmatpush1.msra.mxu0 0.0
        %386 = vmatprep.subr.mxu0 0.0
        %387 = vmatpush1.msra.mxu0 0.0
        %388 = vmatprep.subr.mxu0 0.0
        %389 = vmatpush1.msra.mxu0 0.0
        %390 = vmatprep.subr.mxu0 0.0
        %391 = vmatpush1.msra.mxu0 0.0
        %392 = vmatprep.subr.mxu0 0.0
        %393 = vmatpush1.msra.mxu0 0.0
        %394 = vmatprep.subr.mxu0 0.0
        %395 = vmatpush1.msra.mxu0 0.0
        %396 = vmatprep.subr.mxu0 0.0
        %397 = vmatpush1.msra.mxu0 0.0
        %398 = vmatprep.subr.mxu0 0.0
        %399 = vmatpush1.msra.mxu0 0.0
        %400 = vmatprep.subr.mxu0 0.0
        %401 = vmatpush1.msra.mxu0 0.0
        %402 = vmatprep.subr.mxu0 0.0
        %403 = vmatpush1.msra.mxu0 0.0
        %404 = vmatprep.subr.mxu0 0.0
        %405 = vmatpush1.msra.mxu0 0.0
        %406 = vmatprep.subr.mxu0 0.0
        %407 = vmatpush1.msra.mxu0 0.0
        %408 = vmatprep.subr.mxu0 0.0
        %409 = vmatpush1.msra.mxu0 0.0
        %410 = vmatprep.subr.mxu0 0.0
        %411 = vmatpush1.msra.mxu0 0.0
        %412 = vmatprep.subr.mxu0 0.0
        %413 = vmatpush1.msra.mxu0 0.0
        %414 = vmatprep.subr.mxu0 0.0
        %415 = vmatpush1.msra.mxu0 0.0
        %416 = vmatprep.subr.mxu0 0.0
        %417 = vmatpush1.msra.mxu0 0.0
        %418 = vmatprep.subr.mxu0 0.0
        %419 = vmatpush1.msra.mxu0 0.0
        %420 = vmatprep.subr.mxu0 0.0
        %421 = vmatpush1.msra.mxu0 0.0
        %422 = vmatprep.subr.mxu0 0.0
        %423 = vmatpush1.msra.mxu0 0.0
        %424 = vmatprep.subr.mxu0 0.0
        %425 = vmatpush1.msra.mxu0 0.0
        %426 = vmatprep.subr.mxu0 0.0
        %427 = vmatpush1.msra.mxu0 0.0
        %428 = vmatprep.subr.mxu0 0.0
        %429 = vmatpush1.msra.mxu0 0.0
        %430 = vmatprep.subr.mxu0 0.0
        %431 = vmatpush1.msra.mxu0 0.0
        %432 = vmatprep.subr.mxu0 0.0
        %433 = vmatpush1.msra.mxu0 0.0
        %434 = vmatprep.subr.mxu0 0.0
        %435 = vmatpush1.msra.mxu0 0.0
        %436 = vmatprep.subr.mxu0 0.0
        %437 = vmatpush1.msra.mxu0 0.0
        %438 = vmatprep.subr.mxu0 0.0
        %439 = vmatpush1.msra.mxu0 0.0
        %440 = vmatprep.subr.mxu0 0.0
        %441 = vmatpush1.msra.mxu0 0.0
        %442 = vmatprep.mubr.f32.mxu0 0.0
        %443 = vmatmul.mubr.f32.gmra.mrb[0].mxu0 %v376
        %v444 = vpop.f32.mrb[0].mxu0
        %v445 = vadd.f32 0.0, %v444
        %v446 = vpop.f32.mrb[0].mxu0
        %447 = vdwg.mxu0
        %v449 = vsel %vm374, %v363, 0
        %451 = vmatprep.subr.mxu0 0.0
        %452 = vmatpush1.msra.mxu0 %v367
        %453 = vmatprep.subr.mxu0 0.0
        %454 = vmatpush1.msra.mxu0 0.0
        %455 = vmatprep.subr.mxu0 0.0
        %456 = vmatpush1.msra.mxu0 0.0
        %457 = vmatprep.subr.mxu0 0.0
        %458 = vmatpush1.msra.mxu0 0.0
        %459 = vmatprep.subr.mxu0 0.0
        %460 = vmatpush1.msra.mxu0 0.0
        %461 = vmatprep.subr.mxu0 0.0
        %462 = vmatpush1.msra.mxu0 0.0
        %463 = vmatprep.subr.mxu0 0.0
        %464 = vmatpush1.msra.mxu0 0.0
        %465 = vmatprep.subr.mxu0 0.0
        %466 = vmatpush1.msra.mxu0 0.0
        %467 = vmatprep.subr.mxu0 0.0
        %468 = vmatpush1.msra.mxu0 0.0
        %469 = vmatprep.subr.mxu0 0.0
        %470 = vmatpush1.msra.mxu0 0.0
        %471 = vmatprep.subr.mxu0 0.0
        %472 = vmatpush1.msra.mxu0 0.0
        %473 = vmatprep.subr.mxu0 0.0
        %474 = vmatpush1.msra.mxu0 0.0
        %475 = vmatprep.subr.mxu0 0.0
        %476 = vmatpush1.msra.mxu0 0.0
        %477 = vmatprep.subr.mxu0 0.0
        %478 = vmatpush1.msra.mxu0 0.0
        %479 = vmatprep.subr.mxu0 0.0
        %480 = vmatpush1.msra.mxu0 0.0
        %481 = vmatprep.subr.mxu0 0.0
        %482 = vmatpush1.msra.mxu0 0.0
        %483 = vmatprep.subr.mxu0 0.0
        %484 = vmatpush1.msra.mxu0 0.0
        %485 = vmatprep.subr.mxu0 0.0
        %486 = vmatpush1.msra.mxu0 0.0
        %487 = vmatprep.subr.mxu0 0.0
        %488 = vmatpush1.msra.mxu0 0.0
        %489 = vmatprep.subr.mxu0 0.0
        %490 = vmatpush1.msra.mxu0 0.0
        %491 = vmatprep.subr.mxu0 0.0
        %492 = vmatpush1.msra.mxu0 0.0
        %493 = vmatprep.subr.mxu0 0.0
        %494 = vmatpush1.msra.mxu0 0.0
        %495 = vmatprep.subr.mxu0 0.0
        %496 = vmatpush1.msra.mxu0 0.0
        %497 = vmatprep.subr.mxu0 0.0
        %498 = vmatpush1.msra.mxu0 0.0
        %499 = vmatprep.subr.mxu0 0.0
        %500 = vmatpush1.msra.mxu0 0.0
        %501 = vmatprep.subr.mxu0 0.0
        %502 = vmatpush1.msra.mxu0 0.0
        %503 = vmatprep.subr.mxu0 0.0
        %504 = vmatpush1.msra.mxu0 0.0
        %505 = vmatprep.subr.mxu0 0.0
        %506 = vmatpush1.msra.mxu0 0.0
        %507 = vmatprep.subr.mxu0 0.0
        %508 = vmatpush1.msra.mxu0 0.0
        %509 = vmatprep.subr.mxu0 0.0
        %510 = vmatpush1.msra.mxu0 0.0
        %511 = vmatprep.subr.mxu0 0.0
        %512 = vmatpush1.msra.mxu0 0.0
        %513 = vmatprep.subr.mxu0 0.0
        %514 = vmatpush1.msra.mxu0 0.0
        %515 = vmatprep.mubr.f32.mxu0 0.0
        %516 = vmatmul.mubr.f32.gmra.mrb[0].mxu0 %v449
        %v517 = vpop.f32.mrb[0].mxu0
        %v518 = vadd.f32 0.0, %v517
        %v519 = vpop.f32.mrb[0].mxu0
        %520 = vdwg.mxu0
        %v522 = vsel %vm374, %v364, 0
        %524 = vmatprep.subr.mxu0 0.0
        %525 = vmatpush1.msra.mxu0 %v368
        %526 = vmatprep.subr.mxu0 0.0
        %527 = vmatpush1.msra.mxu0 0.0
        %528 = vmatprep.subr.mxu0 0.0
        %529 = vmatpush1.msra.mxu0 0.0
        %530 = vmatprep.subr.mxu0 0.0
        %531 = vmatpush1.msra.mxu0 0.0
        %532 = vmatprep.subr.mxu0 0.0
        %533 = vmatpush1.msra.mxu0 0.0
        %534 = vmatprep.subr.mxu0 0.0
        %535 = vmatpush1.msra.mxu0 0.0
        %536 = vmatprep.subr.mxu0 0.0
        %537 = vmatpush1.msra.mxu0 0.0
        %538 = vmatprep.subr.mxu0 0.0
        %539 = vmatpush1.msra.mxu0 0.0
        %540 = vmatprep.subr.mxu0 0.0
        %541 = vmatpush1.msra.mxu0 0.0
        %542 = vmatprep.subr.mxu0 0.0
        %543 = vmatpush1.msra.mxu0 0.0
        %544 = vmatprep.subr.mxu0 0.0
        %545 = vmatpush1.msra.mxu0 0.0
        %546 = vmatprep.subr.mxu0 0.0
        %547 = vmatpush1.msra.mxu0 0.0
        %548 = vmatprep.subr.mxu0 0.0
        %549 = vmatpush1.msra.mxu0 0.0
        %550 = vmatprep.subr.mxu0 0.0
        %551 = vmatpush1.msra.mxu0 0.0
        %552 = vmatprep.subr.mxu0 0.0
        %553 = vmatpush1.msra.mxu0 0.0
        %554 = vmatprep.subr.mxu0 0.0
        %555 = vmatpush1.msra.mxu0 0.0
        %556 = vmatprep.subr.mxu0 0.0
        %557 = vmatpush1.msra.mxu0 0.0
        %558 = vmatprep.subr.mxu0 0.0
        %559 = vmatpush1.msra.mxu0 0.0
        %560 = vmatprep.subr.mxu0 0.0
        %561 = vmatpush1.msra.mxu0 0.0
        %562 = vmatprep.subr.mxu0 0.0
        %563 = vmatpush1.msra.mxu0 0.0
        %564 = vmatprep.subr.mxu0 0.0
        %565 = vmatpush1.msra.mxu0 0.0
        %566 = vmatprep.subr.mxu0 0.0
        %567 = vmatpush1.msra.mxu0 0.0
        %568 = vmatprep.subr.mxu0 0.0
        %569 = vmatpush1.msra.mxu0 0.0
        %570 = vmatprep.subr.mxu0 0.0
        %571 = vmatpush1.msra.mxu0 0.0
        %572 = vmatprep.subr.mxu0 0.0
        %573 = vmatpush1.msra.mxu0 0.0
        %574 = vmatprep.subr.mxu0 0.0
        %575 = vmatpush1.msra.mxu0 0.0
        %576 = vmatprep.subr.mxu0 0.0
        %577 = vmatpush1.msra.mxu0 0.0
        %578 = vmatprep.subr.mxu0 0.0
        %579 = vmatpush1.msra.mxu0 0.0
        %580 = vmatprep.subr.mxu0 0.0
        %581 = vmatpush1.msra.mxu0 0.0
        %582 = vmatprep.subr.mxu0 0.0
        %583 = vmatpush1.msra.mxu0 0.0
        %584 = vmatprep.subr.mxu0 0.0
        %585 = vmatpush1.msra.mxu0 0.0
        %586 = vmatprep.subr.mxu0 0.0
        %587 = vmatpush1.msra.mxu0 0.0
        %588 = vmatprep.mubr.f32.mxu0 0.0
        %589 = vmatmul.mubr.f32.gmra.mrb[0].mxu0 %v522
        %v590 = vpop.f32.mrb[0].mxu0
        %v591 = vadd.f32 0.0, %v590
        %v592 = vpop.f32.mrb[0].mxu0
        %593 = vdwg.mxu0
        %v595 = vsel %vm374, %v365, 0
        %597 = vmatprep.subr.mxu0 0.0
        %598 = vmatpush1.msra.mxu0 %v369
        %599 = vmatprep.subr.mxu0 0.0
        %600 = vmatpush1.msra.mxu0 0.0
        %601 = vmatprep.subr.mxu0 0.0
        %602 = vmatpush1.msra.mxu0 0.0
        %603 = vmatprep.subr.mxu0 0.0
        %604 = vmatpush1.msra.mxu0 0.0
        %605 = vmatprep.subr.mxu0 0.0
        %606 = vmatpush1.msra.mxu0 0.0
        %607 = vmatprep.subr.mxu0 0.0
        %608 = vmatpush1.msra.mxu0 0.0
        %609 = vmatprep.subr.mxu0 0.0
        %610 = vmatpush1.msra.mxu0 0.0
        %611 = vmatprep.subr.mxu0 0.0
        %612 = vmatpush1.msra.mxu0 0.0
        %613 = vmatprep.subr.mxu0 0.0
        %614 = vmatpush1.msra.mxu0 0.0
        %615 = vmatprep.subr.mxu0 0.0
        %616 = vmatpush1.msra.mxu0 0.0
        %617 = vmatprep.subr.mxu0 0.0
        %618 = vmatpush1.msra.mxu0 0.0
        %619 = vmatprep.subr.mxu0 0.0
        %620 = vmatpush1.msra.mxu0 0.0
        %621 = vmatprep.subr.mxu0 0.0
        %622 = vmatpush1.msra.mxu0 0.0
        %623 = vmatprep.subr.mxu0 0.0
        %624 = vmatpush1.msra.mxu0 0.0
        %625 = vmatprep.subr.mxu0 0.0
        %626 = vmatpush1.msra.mxu0 0.0
        %627 = vmatprep.subr.mxu0 0.0
        %628 = vmatpush1.msra.mxu0 0.0
        %629 = vmatprep.subr.mxu0 0.0
        %630 = vmatpush1.msra.mxu0 0.0
        %631 = vmatprep.subr.mxu0 0.0
        %632 = vmatpush1.msra.mxu0 0.0
        %633 = vmatprep.subr.mxu0 0.0
        %634 = vmatpush1.msra.mxu0 0.0
        %635 = vmatprep.subr.mxu0 0.0
        %636 = vmatpush1.msra.mxu0 0.0
        %637 = vmatprep.subr.mxu0 0.0
        %638 = vmatpush1.msra.mxu0 0.0
        %639 = vmatprep.subr.mxu0 0.0
        %640 = vmatpush1.msra.mxu0 0.0
        %641 = vmatprep.subr.mxu0 0.0
        %642 = vmatpush1.msra.mxu0 0.0
        %643 = vmatprep.subr.mxu0 0.0
        %644 = vmatpush1.msra.mxu0 0.0
        %645 = vmatprep.subr.mxu0 0.0
        %646 = vmatpush1.msra.mxu0 0.0
        %647 = vmatprep.subr.mxu0 0.0
        %648 = vmatpush1.msra.mxu0 0.0
        %649 = vmatprep.subr.mxu0 0.0
        %650 = vmatpush1.msra.mxu0 0.0
        %651 = vmatprep.subr.mxu0 0.0
        %652 = vmatpush1.msra.mxu0 0.0
        %653 = vmatprep.subr.mxu0 0.0
        %654 = vmatpush1.msra.mxu0 0.0
        %655 = vmatprep.subr.mxu0 0.0
        %656 = vmatpush1.msra.mxu0 0.0
        %657 = vmatprep.subr.mxu0 0.0
        %658 = vmatpush1.msra.mxu0 0.0
        %659 = vmatprep.subr.mxu0 0.0
        %660 = vmatpush1.msra.mxu0 0.0
        %661 = vmatprep.mubr.f32.mxu0 0.0
        %662 = vmatmul.mubr.f32.gmra.mrb[0].mxu0 %v595
        %v663 = vpop.f32.mrb[0].mxu0
        %v664 = vadd.f32 0.0, %v663
        %v665 = vpop.f32.mrb[0].mxu0
        %666 = vdwg.mxu0
        %v667 = vsel %vm374, %v445, -inf
        %668 = vmax.xlane.f32.xlu0 %v667
        %v669 = vpop.xlane.xlu0 %668
        %v670 = vsel %vm374, %v518, -inf
        %671 = vmax.xlane.f32.xlu0 %v670
        %v672 = vpop.xlane.xlu0 %671
        %v673 = vsel %vm374, %v591, -inf
        %674 = vmax.xlane.f32.xlu0 %v673
        %v675 = vpop.xlane.xlu0 %674
        %v676 = vsel %vm374, %v664, -inf
        %677 = vmax.xlane.f32.xlu0 %v676
        %v678 = vpop.xlane.xlu0 %677
        %v679 = vsub.f32 %v445, %v669
        %v680 = vsub.f32 %v518, %v672
        %v681 = vsub.f32 %v591, %v675
        %v682 = vsub.f32 %v664, %v678
        %v683 = vmul.f32 %v679, 1.442695
        %v684 = vpow.pop %v683
        %v685 = vmul.f32 %v680, 1.442695
        %v686 = vpow.pop %v685
        %v687 = vmul.f32 %v681, 1.442695
        %v688 = vpow.pop %v687
        %v689 = vmul.f32 %v682, 1.442695
        %v690 = vpow.pop %v689
        %v691 = vsel %vm374, %v684, 0.0
        %692 = vadd.xlane.f32.xlu0 %v691
        %v693 = vpop.xlane.xlu0 %692
        %v694 = vsel %vm374, %v686, 0.0
        %695 = vadd.xlane.f32.xlu0 %v694
        %v696 = vpop.xlane.xlu0 %695
        %v697 = vsel %vm374, %v688, 0.0
        %698 = vadd.xlane.f32.xlu0 %v697
        %v699 = vpop.xlane.xlu0 %698
        %v700 = vsel %vm374, %v690, 0.0
        %701 = vadd.xlane.f32.xlu0 %v700
        %v702 = vpop.xlane.xlu0 %701
        %v703 = vrcp.pop %v693
        %v704 = vrcp.pop %v696
        %v705 = vrcp.pop %v699
        %v706 = vrcp.pop %v702
        %v707 = vmul.f32 %v684, %v703
        %v708 = vmul.f32 %v686, %v704
        %v709 = vmul.f32 %v688, %v705
        %v710 = vmul.f32 %v690, %v706
        %v712 = vsel %vm374, %v707, 0
        %714 = vmatprep.subr.mxu0 0.0
        %715 = vmatpush1.msra.mxu0 %v370
        %716 = vmatprep.subr.mxu0 0.0
        %717 = vmatpush1.msra.mxu0 0.0
        %718 = vmatprep.subr.mxu0 0.0
        %719 = vmatpush1.msra.mxu0 0.0
        %720 = vmatprep.subr.mxu0 0.0
        %721 = vmatpush1.msra.mxu0 0.0
        %722 = vmatprep.subr.mxu0 0.0
        %723 = vmatpush1.msra.mxu0 0.0
        %724 = vmatprep.subr.mxu0 0.0
        %725 = vmatpush1.msra.mxu0 0.0
        %726 = vmatprep.subr.mxu0 0.0
        %727 = vmatpush1.msra.mxu0 0.0
        %728 = vmatprep.subr.mxu0 0.0
        %729 = vmatpush1.msra.mxu0 0.0
        %730 = vmatprep.subr.mxu0 0.0
        %731 = vmatpush1.msra.mxu0 0.0
        %732 = vmatprep.subr.mxu0 0.0
        %733 = vmatpush1.msra.mxu0 0.0
        %734 = vmatprep.subr.mxu0 0.0
        %735 = vmatpush1.msra.mxu0 0.0
        %736 = vmatprep.subr.mxu0 0.0
        %737 = vmatpush1.msra.mxu0 0.0
        %738 = vmatprep.subr.mxu0 0.0
        %739 = vmatpush1.msra.mxu0 0.0
        %740 = vmatprep.subr.mxu0 0.0
        %741 = vmatpush1.msra.mxu0 0.0
        %742 = vmatprep.subr.mxu0 0.0
        %743 = vmatpush1.msra.mxu0 0.0
        %744 = vmatprep.subr.mxu0 0.0
        %745 = vmatpush1.msra.mxu0 0.0
        %746 = vmatprep.subr.mxu0 0.0
        %747 = vmatpush1.msra.mxu0 0.0
        %748 = vmatprep.subr.mxu0 0.0
        %749 = vmatpush1.msra.mxu0 0.0
        %750 = vmatprep.subr.mxu0 0.0
        %751 = vmatpush1.msra.mxu0 0.0
        %752 = vmatprep.subr.mxu0 0.0
        %753 = vmatpush1.msra.mxu0 0.0
        %754 = vmatprep.subr.mxu0 0.0
        %755 = vmatpush1.msra.mxu0 0.0
        %756 = vmatprep.subr.mxu0 0.0
        %757 = vmatpush1.msra.mxu0 0.0
        %758 = vmatprep.subr.mxu0 0.0
        %759 = vmatpush1.msra.mxu0 0.0
        %760 = vmatprep.subr.mxu0 0.0
        %761 = vmatpush1.msra.mxu0 0.0
        %762 = vmatprep.subr.mxu0 0.0
        %763 = vmatpush1.msra.mxu0 0.0
        %764 = vmatprep.subr.mxu0 0.0
        %765 = vmatpush1.msra.mxu0 0.0
        %766 = vmatprep.subr.mxu0 0.0
        %767 = vmatpush1.msra.mxu0 0.0
        %768 = vmatprep.subr.mxu0 0.0
        %769 = vmatpush1.msra.mxu0 0.0
        %770 = vmatprep.subr.mxu0 0.0
        %771 = vmatpush1.msra.mxu0 0.0
        %772 = vmatprep.subr.mxu0 0.0
        %773 = vmatpush1.msra.mxu0 0.0
        %774 = vmatprep.subr.mxu0 0.0
        %775 = vmatpush1.msra.mxu0 0.0
        %776 = vmatprep.subr.mxu0 0.0
        %777 = vmatpush1.msra.mxu0 0.0
        %778 = vmatprep.mubr.f32.mxu0 0.0
        %779 = vmatmul.mubr.f32.gmra.mrb[0].mxu0 %v712
        %v780 = vpop.f32.mrb[0].mxu0
        %v781 = vadd.f32 0.0, %v780
        %v782 = vpop.f32.mrb[0].mxu0
        %783 = vdwg.mxu0
        %v785 = vsel %vm374, %v708, 0
        %787 = vmatprep.subr.mxu0 0.0
        %788 = vmatpush1.msra.mxu0 %v371
        %789 = vmatprep.subr.mxu0 0.0
        %790 = vmatpush1.msra.mxu0 0.0
        %791 = vmatprep.subr.mxu0 0.0
        %792 = vmatpush1.msra.mxu0 0.0
        %793 = vmatprep.subr.mxu0 0.0
        %794 = vmatpush1.msra.mxu0 0.0
        %795 = vmatprep.subr.mxu0 0.0
        %796 = vmatpush1.msra.mxu0 0.0
        %797 = vmatprep.subr.mxu0 0.0
        %798 = vmatpush1.msra.mxu0 0.0
        %799 = vmatprep.subr.mxu0 0.0
        %800 = vmatpush1.msra.mxu0 0.0
        %801 = vmatprep.subr.mxu0 0.0
        %802 = vmatpush1.msra.mxu0 0.0
        %803 = vmatprep.subr.mxu0 0.0
        %804 = vmatpush1.msra.mxu0 0.0
        %805 = vmatprep.subr.mxu0 0.0
        %806 = vmatpush1.msra.mxu0 0.0
        %807 = vmatprep.subr.mxu0 0.0
        %808 = vmatpush1.msra.mxu0 0.0
        %809 = vmatprep.subr.mxu0 0.0
        %810 = vmatpush1.msra.mxu0 0.0
        %811 = vmatprep.subr.mxu0 0.0
        %812 = vmatpush1.msra.mxu0 0.0
        %813 = vmatprep.subr.mxu0 0.0
        %814 = vmatpush1.msra.mxu0 0.0
        %815 = vmatprep.subr.mxu0 0.0
        %816 = vmatpush1.msra.mxu0 0.0
        %817 = vmatprep.subr.mxu0 0.0
        %818 = vmatpush1.msra.mxu0 0.0
        %819 = vmatprep.subr.mxu0 0.0
        %820 = vmatpush1.msra.mxu0 0.0
        %821 = vmatprep.subr.mxu0 0.0
        %822 = vmatpush1.msra.mxu0 0.0
        %823 = vmatprep.subr.mxu0 0.0
        %824 = vmatpush1.msra.mxu0 0.0
        %825 = vmatprep.subr.mxu0 0.0
        %826 = vmatpush1.msra.mxu0 0.0
        %827 = vmatprep.subr.mxu0 0.0
        %828 = vmatpush1.msra.mxu0 0.0
        %829 = vmatprep.subr.mxu0 0.0
        %830 = vmatpush1.msra.mxu0 0.0
        %831 = vmatprep.subr.mxu0 0.0
        %832 = vmatpush1.msra.mxu0 0.0
        %833 = vmatprep.subr.mxu0 0.0
        %834 = vmatpush1.msra.mxu0 0.0
        %835 = vmatprep.subr.mxu0 0.0
        %836 = vmatpush1.msra.mxu0 0.0
        %837 = vmatprep.subr.mxu0 0.0
        %838 = vmatpush1.msra.mxu0 0.0
        %839 = vmatprep.subr.mxu0 0.0
        %840 = vmatpush1.msra.mxu0 0.0
        %841 = vmatprep.subr.mxu0 0.0
        %842 = vmatpush1.msra.mxu0 0.0
        %843 = vmatprep.subr.mxu0 0.0
        %844 = vmatpush1.msra.mxu0 0.0
        %845 = vmatprep.subr.mxu0 0.0
        %846 = vmatpush1.msra.mxu0 0.0
        %847 = vmatprep.subr.mxu0 0.0
        %848 = vmatpush1.msra.mxu0 0.0
        %849 = vmatprep.subr.mxu0 0.0
        %850 = vmatpush1.msra.mxu0 0.0
        %851 = vmatprep.mubr.f32.mxu0 0.0
        %852 = vmatmul.mubr.f32.gmra.mrb[0].mxu0 %v785
        %v853 = vpop.f32.mrb[0].mxu0
        %v854 = vadd.f32 0.0, %v853
        %v855 = vpop.f32.mrb[0].mxu0
        %856 = vdwg.mxu0
        %v858 = vsel %vm374, %v709, 0
        %860 = vmatprep.subr.mxu0 0.0
        %861 = vmatpush1.msra.mxu0 %v372
        %862 = vmatprep.subr.mxu0 0.0
        %863 = vmatpush1.msra.mxu0 0.0
        %864 = vmatprep.subr.mxu0 0.0
        %865 = vmatpush1.msra.mxu0 0.0
        %866 = vmatprep.subr.mxu0 0.0
        %867 = vmatpush1.msra.mxu0 0.0
        %868 = vmatprep.subr.mxu0 0.0
        %869 = vmatpush1.msra.mxu0 0.0
        %870 = vmatprep.subr.mxu0 0.0
        %871 = vmatpush1.msra.mxu0 0.0
        %872 = vmatprep.subr.mxu0 0.0
        %873 = vmatpush1.msra.mxu0 0.0
        %874 = vmatprep.subr.mxu0 0.0
        %875 = vmatpush1.msra.mxu0 0.0
        %876 = vmatprep.subr.mxu0 0.0
        %877 = vmatpush1.msra.mxu0 0.0
        %878 = vmatprep.subr.mxu0 0.0
        %879 = vmatpush1.msra.mxu0 0.0
        %880 = vmatprep.subr.mxu0 0.0
        %881 = vmatpush1.msra.mxu0 0.0
        %882 = vmatprep.subr.mxu0 0.0
        %883 = vmatpush1.msra.mxu0 0.0
        %884 = vmatprep.subr.mxu0 0.0
        %885 = vmatpush1.msra.mxu0 0.0
        %886 = vmatprep.subr.mxu0 0.0
        %887 = vmatpush1.msra.mxu0 0.0
        %888 = vmatprep.subr.mxu0 0.0
        %889 = vmatpush1.msra.mxu0 0.0
        %890 = vmatprep.subr.mxu0 0.0
        %891 = vmatpush1.msra.mxu0 0.0
        %892 = vmatprep.subr.mxu0 0.0
        %893 = vmatpush1.msra.mxu0 0.0
        %894 = vmatprep.subr.mxu0 0.0
        %895 = vmatpush1.msra.mxu0 0.0
        %896 = vmatprep.subr.mxu0 0.0
        %897 = vmatpush1.msra.mxu0 0.0
        %898 = vmatprep.subr.mxu0 0.0
        %899 = vmatpush1.msra.mxu0 0.0
        %900 = vmatprep.subr.mxu0 0.0
        %901 = vmatpush1.msra.mxu0 0.0
        %902 = vmatprep.subr.mxu0 0.0
        %903 = vmatpush1.msra.mxu0 0.0
        %904 = vmatprep.subr.mxu0 0.0
        %905 = vmatpush1.msra.mxu0 0.0
        %906 = vmatprep.subr.mxu0 0.0
        %907 = vmatpush1.msra.mxu0 0.0
        %908 = vmatprep.subr.mxu0 0.0
        %909 = vmatpush1.msra.mxu0 0.0
        %910 = vmatprep.subr.mxu0 0.0
        %911 = vmatpush1.msra.mxu0 0.0
        %912 = vmatprep.subr.mxu0 0.0
        %913 = vmatpush1.msra.mxu0 0.0
        %914 = vmatprep.subr.mxu0 0.0
        %915 = vmatpush1.msra.mxu0 0.0
        %916 = vmatprep.subr.mxu0 0.0
        %917 = vmatpush1.msra.mxu0 0.0
        %918 = vmatprep.subr.mxu0 0.0
        %919 = vmatpush1.msra.mxu0 0.0
        %920 = vmatprep.subr.mxu0 0.0
        %921 = vmatpush1.msra.mxu0 0.0
        %922 = vmatprep.subr.mxu0 0.0
        %923 = vmatpush1.msra.mxu0 0.0
        %924 = vmatprep.mubr.f32.mxu0 0.0
        %925 = vmatmul.mubr.f32.gmra.mrb[0].mxu0 %v858
        %v926 = vpop.f32.mrb[0].mxu0
        %v927 = vadd.f32 0.0, %v926
        %v928 = vpop.f32.mrb[0].mxu0
        %929 = vdwg.mxu0
        %v931 = vsel %vm374, %v710, 0
        %933 = vmatprep.subr.mxu0 0.0
        %934 = vmatpush1.msra.mxu0 %v373
        %935 = vmatprep.subr.mxu0 0.0
        %936 = vmatpush1.msra.mxu0 0.0
        %937 = vmatprep.subr.mxu0 0.0
        %938 = vmatpush1.msra.mxu0 0.0
        %939 = vmatprep.subr.mxu0 0.0
        %940 = vmatpush1.msra.mxu0 0.0
        %941 = vmatprep.subr.mxu0 0.0
        %942 = vmatpush1.msra.mxu0 0.0
        %943 = vmatprep.subr.mxu0 0.0
        %944 = vmatpush1.msra.mxu0 0.0
        %945 = vmatprep.subr.mxu0 0.0
        %946 = vmatpush1.msra.mxu0 0.0
        %947 = vmatprep.subr.mxu0 0.0
        %948 = vmatpush1.msra.mxu0 0.0
        %949 = vmatprep.subr.mxu0 0.0
        %950 = vmatpush1.msra.mxu0 0.0
        %951 = vmatprep.subr.mxu0 0.0
        %952 = vmatpush1.msra.mxu0 0.0
        %953 = vmatprep.subr.mxu0 0.0
        %954 = vmatpush1.msra.mxu0 0.0
        %955 = vmatprep.subr.mxu0 0.0
        %956 = vmatpush1.msra.mxu0 0.0
        %957 = vmatprep.subr.mxu0 0.0
        %958 = vmatpush1.msra.mxu0 0.0
        %959 = vmatprep.subr.mxu0 0.0
        %960 = vmatpush1.msra.mxu0 0.0
        %961 = vmatprep.subr.mxu0 0.0
        %962 = vmatpush1.msra.mxu0 0.0
        %963 = vmatprep.subr.mxu0 0.0
        %964 = vmatpush1.msra.mxu0 0.0
        %965 = vmatprep.subr.mxu0 0.0
        %966 = vmatpush1.msra.mxu0 0.0
        %967 = vmatprep.subr.mxu0 0.0
        %968 = vmatpush1.msra.mxu0 0.0
        %969 = vmatprep.subr.mxu0 0.0
        %970 = vmatpush1.msra.mxu0 0.0
        %971 = vmatprep.subr.mxu0 0.0
        %972 = vmatpush1.msra.mxu0 0.0
        %973 = vmatprep.subr.mxu0 0.0
        %974 = vmatpush1.msra.mxu0 0.0
        %975 = vmatprep.subr.mxu0 0.0
        %976 = vmatpush1.msra.mxu0 0.0
        %977 = vmatprep.subr.mxu0 0.0
        %978 = vmatpush1.msra.mxu0 0.0
        %979 = vmatprep.subr.mxu0 0.0
        %980 = vmatpush1.msra.mxu0 0.0
        %981 = vmatprep.subr.mxu0 0.0
        %982 = vmatpush1.msra.mxu0 0.0
        %983 = vmatprep.subr.mxu0 0.0
        %984 = vmatpush1.msra.mxu0 0.0
        %985 = vmatprep.subr.mxu0 0.0
        %986 = vmatpush1.msra.mxu0 0.0
        %987 = vmatprep.subr.mxu0 0.0
        %988 = vmatpush1.msra.mxu0 0.0
        %989 = vmatprep.subr.mxu0 0.0
        %990 = vmatpush1.msra.mxu0 0.0
        %991 = vmatprep.subr.mxu0 0.0
        %992 = vmatpush1.msra.mxu0 0.0
        %993 = vmatprep.subr.mxu0 0.0
        %994 = vmatpush1.msra.mxu0 0.0
        %995 = vmatprep.subr.mxu0 0.0
        %996 = vmatpush1.msra.mxu0 0.0
        %997 = vmatprep.mubr.f32.mxu0 0.0
        %998 = vmatmul.mubr.f32.gmra.mrb[0].mxu0 %v931
        %v999 = vpop.f32.mrb[0].mxu0
        %v1000 = vadd.f32 0.0, %v999
        %v1001 = vpop.f32.mrb[0].mxu0
        %1002 = vdwg.mxu0
        %1003 = vst.msk [vmem:[%s350] sm:$0xff] %vm374, %v707
        %1004 = vst.msk [vmem:[%s350 + $0x8] sm:$0xff] %vm374, %v708
        %1005 = vst.msk [vmem:[%s350 + $0x10] sm:$0xff] %vm374, %v709
        %1006 = vst.msk [vmem:[%s350 + $0x18] sm:$0xff] %vm374, %v710
        %1007 = vst.msk [vmem:[%s343] sm:$0xff] %vm374, %v781
        %1008 = vst.msk [vmem:[%s343 + $0x8] sm:$0xff] %vm374, %v854
        %1009 = vst.msk [vmem:[%s343 + $0x10] sm:$0xff] %vm374, %v927
        %1010 = vst.msk [vmem:[%s343 + $0x18] sm:$0xff] %vm374, %v1000
        %s1011 = sand.u32 %s153, 1
        %s1012 = scalar_lea.sflag [#allocation5], %s1011
        %s1013 = sand.u32 %s153, 1
        %s1014 = smul.addr %s1013, 32
        %s1015 = scalar_lea.vmem [#allocation9], %s1014
        %s1016 = sand.u32 %s181, 1
        %s1017 = scalar_lea.sflag [#allocation11], %s1016
        %s1018 = sand.u32 %s181, 1
        %s1019 = smul.addr %s1018, 32
        %s1020 = scalar_lea.vmem [#allocation10], %s1019
        // Predicated region
        $region49: #{scaled_dot_product_attention.1} parent=35 // pred_check
          %p1021 = pneg %p163
        $region50: #{scaled_dot_product_attention.1} parent=35 // pred_check_branch
          %1023 = sbr.rel (%p1021) target = $region52
        $region51: #{scaled_dot_product_attention.1} parent=35 // pred_region
          %s1024 = smul.u32 4, %s34
          %s1026 = ssub.s32 512, 512
          %1027 = vsyncadd %s1012, %s1026
          %s1028 = sadd.s32 %s35, %s1024
          %s1029 = smul.addr %s1028, 128
          %s1030 = scalar_lea.hbm %s4, %s1029
          %s1031 = sshll.u32 %s1015, 4
          %s1032 = int_to_ptr.vmem [resolvable:$true] %s1031
          %1037 = dma.vmem_to_hbm [thread:$0]  %s1032, 512, %s1030, %s1012, 128, 128, 8
        $region52: #{scaled_dot_product_attention.1} parent=35 // pred_fallthru
          _
        // Predicated region
        $region53: #{scaled_dot_product_attention.1} parent=35 // pred_check
          %p1038 = pneg %p191
        $region54: #{scaled_dot_product_attention.1} parent=35 // pred_check_branch
          %1040 = sbr.rel (%p1038) target = $region56
        $region55: #{scaled_dot_product_attention.1} parent=35 // pred_region
          %s1041 = smul.u32 4, %s34
          %s1043 = ssub.s32 512, 512
          %1044 = vsyncadd %s1017, %s1043
          %s1045 = sadd.s32 %s35, %s1041
          %s1046 = smul.addr %s1045, 128
          %s1047 = scalar_lea.hbm %s5, %s1046
          %s1048 = sshll.u32 %s1020, 4
          %s1049 = int_to_ptr.vmem [resolvable:$true] %s1048
          %1054 = dma.vmem_to_hbm [thread:$0]  %s1049, 512, %s1047, %s1017, 128, 128, 8
        $region56: #{scaled_dot_product_attention.1} parent=35 // pred_fallthru
          _
      $region36: #{scaled_dot_product_attention.1} parent=5 // pred_fallthru
        _
      %p1055 = scmp.le.s32.totalorder 2, %s25
      // Predicated region
      $region57: #{scaled_dot_product_attention.1} parent=5 // pred_check
        %p1056 = pneg %p1055
      $region58: #{scaled_dot_product_attention.1} parent=5 // pred_check_branch
        %1058 = sbr.rel (%p1056) target = $region60
      $region59: #{scaled_dot_product_attention.1} parent=5 // pred_region
        %s1059 = ssub.s32 %s25, 2
        // Predicated region
        $region61: #{scaled_dot_product_attention.1} parent=59 // pred_check
          %p1060 = pneg %p169
        $region62: #{scaled_dot_product_attention.1} parent=59 // pred_check_branch
          %1062 = sbr.rel (%p1060) target = $region64
        $region63: #{scaled_dot_product_attention.1} parent=59 // pred_region
          %s1063 = sand.u32 %s154, 1
          %s1064 = scalar_lea.sflag [#allocation5], %s1063
          %s1065 = sand.u32 %s154, 1
          %s1066 = smul.addr %s1065, 32
          %s1067 = scalar_lea.vmem [#allocation9], %s1066
          %1068 = dma.done %s1064, 512
        $region64: #{scaled_dot_product_attention.1} parent=59 // pred_fallthru
          _
        // Predicated region
        $region65: #{scaled_dot_product_attention.1} parent=59 // pred_check
          %p1069 = pneg %p197
        $region66: #{scaled_dot_product_attention.1} parent=59 // pred_check_branch
          %1071 = sbr.rel (%p1069) target = $region68
        $region67: #{scaled_dot_product_attention.1} parent=59 // pred_region
          %s1072 = sand.u32 %s182, 1
          %s1073 = scalar_lea.sflag [#allocation11], %s1072
          %s1074 = sand.u32 %s182, 1
          %s1075 = smul.addr %s1074, 32
          %s1076 = scalar_lea.vmem [#allocation10], %s1075
          %1077 = dma.done %s1073, 512
        $region68: #{scaled_dot_product_attention.1} parent=59 // pred_fallthru
          _
      $region60: #{scaled_dot_product_attention.1} parent=5 // pred_fallthru
        _
    $region6: #{scaled_dot_product_attention.1} parent=1 // loop_footer
      %s29 = sadd.s32 1, %s25
    $region7: #{scaled_dot_product_attention.1} parent=1 // loop_footer_branch
      %24 = sbr.rel target = $region3
    $region8: #{scaled_dot_product_attention.1} parent=1 // loop_exit
      _
    %1078 = vsyncpa [#allocation4], 1
    %s1079 = scalar_lea.sflag [#allocation4], 1
    %1080 = vsyncpa %s1079, 1
    %1081 = vsyncpa [#allocation7], 1
    %s1082 = scalar_lea.sflag [#allocation7], 1
    %1083 = vsyncpa %s1082, 1
    %1084 = vsyncpa [#allocation5], 1
    %s1085 = scalar_lea.sflag [#allocation5], 1
    %1086 = vsyncpa %s1085, 1
    %1087 = vsyncpa [#allocation11], 1
    %s1088 = scalar_lea.sflag [#allocation11], 1
    %1089 = vsyncpa %s1088, 1

</llo_original>
